<compile_context>
chip_gen: v5e
topology: v5e:2x2
jax: 0.10.0
libtpu: 0.0.40
codegen_flags: <defaults>
</compile_context>

<pallas_src>
import functools

import jax
import jax.numpy as jnp
from jax.experimental import pallas as pl
from jax.experimental.pallas import tpu as pltpu


def _round_up(n, m):
    return ((n + m - 1) // m) * m


def lstm_last_linear_kernel(x_ref, p_ref, o_ref, *, seq_len, batch, hidden, in_dim,
                            row_offsets):
    # x_ref: (T*B, I)  f32, time-major rows (row = t*B + b)
    # p_ref: (R, L)    f32, packed params, L = round_up(max(4H, C), 128)
    # o_ref: (B, L)    f32, lane-dense output slab (first C lanes meaningful)
    T, B, H, I = seq_len, batch, hidden, in_dim
    G = 4 * H
    r_wih, r_whh, r_b, r_wout, r_bout = row_offsets

    # Static row slices of the single packed parameter buffer (8-row-aligned blocks).
    wih = p_ref[r_wih:r_wih + I, :G]        # (I, 4H)
    whh = p_ref[r_whh:r_whh + H, :G]        # (H, 4H)
    b = p_ref[r_b:r_b + 1, :G]              # (1, 4H)  = b_ih + b_hh
    wout = p_ref[r_wout:r_wout + H, :]      # (H, L)   (C lane-padded with zeros)
    bout = p_ref[r_bout:r_bout + 1, :]      # (1, L)

    # Hoisted input projection: one MXU matmul + bias for all T*B rows, off the
    # serial recurrence chain.
    gates_x = (jnp.dot(x_ref[...], wih, preferred_element_type=jnp.float32)
               + b)                                             # (T*B, 4H) f32

    h = jnp.zeros((B, H), jnp.float32)
    c = jnp.zeros((B, H), jnp.float32)

    # Fully unrolled recurrence (T static & small): only h @ W_hh + gate math are on
    # the serial chain; per-step x access is a static leading-row slice.
    # TODO(synk): for T >> 64 switch to lax.fori_loop(..., unroll=k) and stream the
    # gates through VMEM scratch to bound live ranges.
    for t in range(T):
        g_x = gates_x[t * B:(t + 1) * B, :]                     # static row slice
        gates = g_x + jnp.dot(h, whh,
                              preferred_element_type=jnp.float32)   # (B, 4H) f32
        # Full-width nonlinearities (extra EUP lanes are free), then slice the
        # pre-activated gates.  PyTorch gate order: [i | f | g | o].
        sig = jax.nn.sigmoid(gates)
        tnh = jnp.tanh(gates)
        i_g = sig[:, 0 * H:1 * H]
        f_g = sig[:, 1 * H:2 * H]
        g_g = tnh[:, 2 * H:3 * H]
        o_g = sig[:, 3 * H:4 * H]
        c = f_g * c + i_g * g_g
        h = o_g * jnp.tanh(c)

    # ffOut: Linear(H -> C) on the last-timestep hidden state; lane-dense store.
    o_ref[...] = jnp.dot(h, wout, preferred_element_type=jnp.float32) + bout


@functools.partial(jax.jit,
                   static_argnames=("hidden_dim", "n_classes", "row_offsets"))
def _forward_impl(state, packed, *, hidden_dim, n_classes, row_offsets):
    B, T, I = state.shape
    lanes = packed.shape[1]
    # Time-major rows (row = t*B + b) so each timestep is a static leading-row slice
    # in-kernel; allow_input_fusion lets XLA fuse this transpose/reshape into the
    # pallas_call operand instead of dispatching it as a separate kernel.
    x_tb = jnp.swapaxes(state, 0, 1).reshape(T * B, I)

    kernel = functools.partial(lstm_last_linear_kernel, seq_len=T, batch=B,
                               hidden=hidden_dim, in_dim=I, row_offsets=row_offsets)
    out_pad = pl.pallas_call(
        kernel,
        out_shape=jax.ShapeDtypeStruct((B, lanes), jnp.float32),
        in_specs=[pl.BlockSpec(memory_space=pltpu.MemorySpace.VMEM)] * 2,
        out_specs=pl.BlockSpec(memory_space=pltpu.MemorySpace.VMEM),
        compiler_params=pltpu.CompilerParams(
            allow_input_fusion=(True, False)),      # (x_tb, packed)
    )(x_tb, packed)
    # Lane-dense kernel output -> logical (B, nClasses); fuses under jit.
    return out_pad[:, :n_classes]


def price_prediction_forward(state, params):
    """state: (B, T, nSignal) f32 -> (B, nClasses) f32."""
    return _forward_impl(state, params["packed"],
                         hidden_dim=params["hidden_dim"],
                         n_classes=params["n_classes"],
                         row_offsets=params["row_offsets"])


def init_params(key, n_signal, hidden_dim, n_classes):
    """PyTorch-style init (uniform(-1/sqrt(H), 1/sqrt(H))), packed once on the host
    into a single 128-lane-wide f32 buffer with 8-row-aligned sub-blocks."""
    H, I, C = hidden_dim, n_signal, n_classes
    k = 1.0 / jnp.sqrt(jnp.float32(H))
    keys = jax.random.split(key, 6)
    w_ih = jax.random.uniform(keys[0], (4 * H, I), jnp.float32, -k, k)   # [i,f,g,o]
    w_hh = jax.random.uniform(keys[1], (4 * H, H), jnp.float32, -k, k)
    b_ih = jax.random.uniform(keys[2], (4 * H,), jnp.float32, -k, k)
    b_hh = jax.random.uniform(keys[3], (4 * H,), jnp.float32, -k, k)
    w_out = jax.random.uniform(keys[4], (C, H), jnp.float32, -k, k)
    b_out = jax.random.uniform(keys[5], (C,), jnp.float32, -k, k)

    lanes = _round_up(max(4 * H, C), 128)

    def pad_block(a, rows):
        r, c = a.shape
        return jnp.pad(a, ((0, rows - r), (0, lanes - c)))

    blocks, offsets, row = [], [], 0
    for a in (jnp.transpose(w_ih),                    # (I, 4H)
              jnp.transpose(w_hh),                    # (H, 4H)
              (b_ih + b_hh).reshape(1, 4 * H),        # (1, 4H)
              jnp.transpose(w_out),                   # (H, C)
              b_out.reshape(1, C)):                   # (1, C)
        nrows = _round_up(a.shape[0], 8)
        offsets.append(row)
        blocks.append(pad_block(a, nrows))
        row += nrows
    packed = jnp.concatenate(blocks, axis=0)          # (R, lanes) f32, one DMA

    return {
        "packed": packed,
        "row_offsets": tuple(offsets),
        "hidden_dim": H,
        "n_classes": C,
    }


if __name__ == "__main__":
    # Shapes consistent with the module: nSignal=4, seq=8, batch=2,
    # hiddenDim(args.ff_dims)=32, nLayers=1 (-> LSTM dropout=0), nClasses=3.
    B, T, N_SIGNAL, HIDDEN, N_CLASSES = 2, 8, 4, 32, 3

    key = jax.random.PRNGKey(0)
    k_x, k_p = jax.random.split(key)
    state = jax.random.normal(k_x, (B, T, N_SIGNAL), jnp.float32)
    params = init_params(k_p, N_SIGNAL, HIDDEN, N_CLASSES)

    out = price_prediction_forward(state, params)
    jax.block_until_ready(out)
    assert out.shape == (B, N_CLASSES) and out.dtype == jnp.float32
    assert bool(jnp.all(jnp.isfinite(out)))
    print("KERNEL_OK")
</pallas_src>

<mosaic_0001>
module attributes {stable_mosaic.version = 11 : i64} {
  func.func @lstm_last_linear_kernel(%arg0: memref<16x4xf32, #tpu.memory_space<vmem>>, %arg1: memref<88x128xf32, #tpu.memory_space<vmem>>, %arg2: memref<2x128xf32, #tpu.memory_space<vmem>>) attributes {dimension_semantics = [], scalar_prefetch = 0 : i64, scratch_operands = 0 : i64, tpu.core_type = #tpu.core_type<tc>} {
    %c0 = arith.constant 0 : index
    %c0_0 = arith.constant 0 : index
    %0 = vector.load %arg1[%c0, %c0_0] : memref<88x128xf32, #tpu.memory_space<vmem>>, vector<4x128xf32>
    %c8 = arith.constant 8 : index
    %c0_1 = arith.constant 0 : index
    %1 = vector.load %arg1[%c8, %c0_1] : memref<88x128xf32, #tpu.memory_space<vmem>>, vector<32x128xf32>
    %c40 = arith.constant 40 : index
    %c0_2 = arith.constant 0 : index
    %2 = vector.load %arg1[%c40, %c0_2] : memref<88x128xf32, #tpu.memory_space<vmem>>, vector<1x128xf32>
    %c48 = arith.constant 48 : index
    %c0_3 = arith.constant 0 : index
    %3 = vector.load %arg1[%c48, %c0_3] : memref<88x128xf32, #tpu.memory_space<vmem>>, vector<32x128xf32>
    %c80 = arith.constant 80 : index
    %c0_4 = arith.constant 0 : index
    %4 = vector.load %arg1[%c80, %c0_4] : memref<88x128xf32, #tpu.memory_space<vmem>>, vector<1x128xf32>
    %c0_5 = arith.constant 0 : index
    %c0_6 = arith.constant 0 : index
    %5 = vector.load %arg0[%c0_5, %c0_6] : memref<16x4xf32, #tpu.memory_space<vmem>>, vector<16x4xf32>
    %cst = arith.constant dense<0.000000e+00> : vector<16x128xf32>
    %6 = tpu.matmul %5, %0, %cst {dimension_numbers = #tpu.dot_dimension_numbers<[1], [0], [0], [1], [0, 0, 1, 1], [], []>} : vector<16x4xf32>, vector<4x128xf32>, vector<16x128xf32> -> vector<16x128xf32>
    %7 = vector.broadcast %2 : vector<1x128xf32> to vector<16x128xf32>
    %8 = arith.addf %6, %7 : vector<16x128xf32>
    %cst_7 = arith.constant 0.000000e+00 : f32
    %9 = vector.broadcast %cst_7 : f32 to vector<2x32xf32>
    %cst_8 = arith.constant 0.000000e+00 : f32
    %10 = vector.broadcast %cst_8 : f32 to vector<2x32xf32>
    %11 = vector.extract_strided_slice %8 {offsets = [0, 0], sizes = [2, 128], strides = [1, 1]} : vector<16x128xf32> to vector<2x128xf32>
    %cst_9 = arith.constant dense<0.000000e+00> : vector<2x128xf32>
    %12 = tpu.matmul %9, %1, %cst_9 {dimension_numbers = #tpu.dot_dimension_numbers<[1], [0], [0], [1], [0, 0, 1, 1], [], []>} : vector<2x32xf32>, vector<32x128xf32>, vector<2x128xf32> -> vector<2x128xf32>
    %13 = arith.addf %11, %12 : vector<2x128xf32>
    %14 = arith.negf %13 : vector<2x128xf32>
    %15 = math.exp %14 : vector<2x128xf32>
    %cst_10 = arith.constant 1.000000e+00 : f32
    %16 = vector.broadcast %cst_10 : f32 to vector<2x128xf32>
    %17 = arith.addf %16, %15 : vector<2x128xf32>
    %18 = arith.divf %16, %17 : vector<2x128xf32>
    %19 = math.tanh %13 : vector<2x128xf32>
    %20 = vector.extract_strided_slice %18 {offsets = [0, 0], sizes = [2, 32], strides = [1, 1]} : vector<2x128xf32> to vector<2x32xf32>
    %21 = vector.extract_strided_slice %18 {offsets = [0, 32], sizes = [2, 32], strides = [1, 1]} : vector<2x128xf32> to vector<2x32xf32>
    %22 = vector.extract_strided_slice %19 {offsets = [0, 64], sizes = [2, 32], strides = [1, 1]} : vector<2x128xf32> to vector<2x32xf32>
    %23 = vector.extract_strided_slice %18 {offsets = [0, 96], sizes = [2, 32], strides = [1, 1]} : vector<2x128xf32> to vector<2x32xf32>
    %24 = arith.mulf %21, %10 : vector<2x32xf32>
    %25 = arith.mulf %20, %22 : vector<2x32xf32>
    %26 = arith.addf %24, %25 : vector<2x32xf32>
    %27 = math.tanh %26 : vector<2x32xf32>
    %28 = arith.mulf %23, %27 : vector<2x32xf32>
    %29 = vector.extract_strided_slice %8 {offsets = [2, 0], sizes = [2, 128], strides = [1, 1]} : vector<16x128xf32> to vector<2x128xf32>
    %cst_11 = arith.constant dense<0.000000e+00> : vector<2x128xf32>
    %30 = tpu.matmul %28, %1, %cst_11 {dimension_numbers = #tpu.dot_dimension_numbers<[1], [0], [0], [1], [0, 0, 1, 1], [], []>} : vector<2x32xf32>, vector<32x128xf32>, vector<2x128xf32> -> vector<2x128xf32>
    %31 = arith.addf %29, %30 : vector<2x128xf32>
    %32 = arith.negf %31 : vector<2x128xf32>
    %33 = math.exp %32 : vector<2x128xf32>
    %cst_12 = arith.constant 1.000000e+00 : f32
    %34 = vector.broadcast %cst_12 : f32 to vector<2x128xf32>
    %35 = arith.addf %34, %33 : vector<2x128xf32>
    %36 = arith.divf %34, %35 : vector<2x128xf32>
    %37 = math.tanh %31 : vector<2x128xf32>
    %38 = vector.extract_strided_slice %36 {offsets = [0, 0], sizes = [2, 32], strides = [1, 1]} : vector<2x128xf32> to vector<2x32xf32>
    %39 = vector.extract_strided_slice %36 {offsets = [0, 32], sizes = [2, 32], strides = [1, 1]} : vector<2x128xf32> to vector<2x32xf32>
    %40 = vector.extract_strided_slice %37 {offsets = [0, 64], sizes = [2, 32], strides = [1, 1]} : vector<2x128xf32> to vector<2x32xf32>
    %41 = vector.extract_strided_slice %36 {offsets = [0, 96], sizes = [2, 32], strides = [1, 1]} : vector<2x128xf32> to vector<2x32xf32>
    %42 = arith.mulf %39, %26 : vector<2x32xf32>
    %43 = arith.mulf %38, %40 : vector<2x32xf32>
    %44 = arith.addf %42, %43 : vector<2x32xf32>
    %45 = math.tanh %44 : vector<2x32xf32>
    %46 = arith.mulf %41, %45 : vector<2x32xf32>
    %47 = vector.extract_strided_slice %8 {offsets = [4, 0], sizes = [2, 128], strides = [1, 1]} : vector<16x128xf32> to vector<2x128xf32>
    %cst_13 = arith.constant dense<0.000000e+00> : vector<2x128xf32>
    %48 = tpu.matmul %46, %1, %cst_13 {dimension_numbers = #tpu.dot_dimension_numbers<[1], [0], [0], [1], [0, 0, 1, 1], [], []>} : vector<2x32xf32>, vector<32x128xf32>, vector<2x128xf32> -> vector<2x128xf32>
    %49 = arith.addf %47, %48 : vector<2x128xf32>
    %50 = arith.negf %49 : vector<2x128xf32>
    %51 = math.exp %50 : vector<2x128xf32>
    %cst_14 = arith.constant 1.000000e+00 : f32
    %52 = vector.broadcast %cst_14 : f32 to vector<2x128xf32>
    %53 = arith.addf %52, %51 : vector<2x128xf32>
    %54 = arith.divf %52, %53 : vector<2x128xf32>
    %55 = math.tanh %49 : vector<2x128xf32>
    %56 = vector.extract_strided_slice %54 {offsets = [0, 0], sizes = [2, 32], strides = [1, 1]} : vector<2x128xf32> to vector<2x32xf32>
    %57 = vector.extract_strided_slice %54 {offsets = [0, 32], sizes = [2, 32], strides = [1, 1]} : vector<2x128xf32> to vector<2x32xf32>
    %58 = vector.extract_strided_slice %55 {offsets = [0, 64], sizes = [2, 32], strides = [1, 1]} : vector<2x128xf32> to vector<2x32xf32>
    %59 = vector.extract_strided_slice %54 {offsets = [0, 96], sizes = [2, 32], strides = [1, 1]} : vector<2x128xf32> to vector<2x32xf32>
    %60 = arith.mulf %57, %44 : vector<2x32xf32>
    %61 = arith.mulf %56, %58 : vector<2x32xf32>
    %62 = arith.addf %60, %61 : vector<2x32xf32>
    %63 = math.tanh %62 : vector<2x32xf32>
    %64 = arith.mulf %59, %63 : vector<2x32xf32>
    %65 = vector.extract_strided_slice %8 {offsets = [6, 0], sizes = [2, 128], strides = [1, 1]} : vector<16x128xf32> to vector<2x128xf32>
    %cst_15 = arith.constant dense<0.000000e+00> : vector<2x128xf32>
    %66 = tpu.matmul %64, %1, %cst_15 {dimension_numbers = #tpu.dot_dimension_numbers<[1], [0], [0], [1], [0, 0, 1, 1], [], []>} : vector<2x32xf32>, vector<32x128xf32>, vector<2x128xf32> -> vector<2x128xf32>
    %67 = arith.addf %65, %66 : vector<2x128xf32>
    %68 = arith.negf %67 : vector<2x128xf32>
    %69 = math.exp %68 : vector<2x128xf32>
    %cst_16 = arith.constant 1.000000e+00 : f32
    %70 = vector.broadcast %cst_16 : f32 to vector<2x128xf32>
    %71 = arith.addf %70, %69 : vector<2x128xf32>
    %72 = arith.divf %70, %71 : vector<2x128xf32>
    %73 = math.tanh %67 : vector<2x128xf32>
    %74 = vector.extract_strided_slice %72 {offsets = [0, 0], sizes = [2, 32], strides = [1, 1]} : vector<2x128xf32> to vector<2x32xf32>
    %75 = vector.extract_strided_slice %72 {offsets = [0, 32], sizes = [2, 32], strides = [1, 1]} : vector<2x128xf32> to vector<2x32xf32>
    %76 = vector.extract_strided_slice %73 {offsets = [0, 64], sizes = [2, 32], strides = [1, 1]} : vector<2x128xf32> to vector<2x32xf32>
    %77 = vector.extract_strided_slice %72 {offsets = [0, 96], sizes = [2, 32], strides = [1, 1]} : vector<2x128xf32> to vector<2x32xf32>
    %78 = arith.mulf %75, %62 : vector<2x32xf32>
    %79 = arith.mulf %74, %76 : vector<2x32xf32>
    %80 = arith.addf %78, %79 : vector<2x32xf32>
    %81 = math.tanh %80 : vector<2x32xf32>
    %82 = arith.mulf %77, %81 : vector<2x32xf32>
    %83 = vector.extract_strided_slice %8 {offsets = [8, 0], sizes = [2, 128], strides = [1, 1]} : vector<16x128xf32> to vector<2x128xf32>
    %cst_17 = arith.constant dense<0.000000e+00> : vector<2x128xf32>
    %84 = tpu.matmul %82, %1, %cst_17 {dimension_numbers = #tpu.dot_dimension_numbers<[1], [0], [0], [1], [0, 0, 1, 1], [], []>} : vector<2x32xf32>, vector<32x128xf32>, vector<2x128xf32> -> vector<2x128xf32>
    %85 = arith.addf %83, %84 : vector<2x128xf32>
    %86 = arith.negf %85 : vector<2x128xf32>
    %87 = math.exp %86 : vector<2x128xf32>
    %cst_18 = arith.constant 1.000000e+00 : f32
    %88 = vector.broadcast %cst_18 : f32 to vector<2x128xf32>
    %89 = arith.addf %88, %87 : vector<2x128xf32>
    %90 = arith.divf %88, %89 : vector<2x128xf32>
    %91 = math.tanh %85 : vector<2x128xf32>
    %92 = vector.extract_strided_slice %90 {offsets = [0, 0], sizes = [2, 32], strides = [1, 1]} : vector<2x128xf32> to vector<2x32xf32>
    %93 = vector.extract_strided_slice %90 {offsets = [0, 32], sizes = [2, 32], strides = [1, 1]} : vector<2x128xf32> to vector<2x32xf32>
    %94 = vector.extract_strided_slice %91 {offsets = [0, 64], sizes = [2, 32], strides = [1, 1]} : vector<2x128xf32> to vector<2x32xf32>
    %95 = vector.extract_strided_slice %90 {offsets = [0, 96], sizes = [2, 32], strides = [1, 1]} : vector<2x128xf32> to vector<2x32xf32>
    %96 = arith.mulf %93, %80 : vector<2x32xf32>
    %97 = arith.mulf %92, %94 : vector<2x32xf32>
    %98 = arith.addf %96, %97 : vector<2x32xf32>
    %99 = math.tanh %98 : vector<2x32xf32>
    %100 = arith.mulf %95, %99 : vector<2x32xf32>
    %101 = vector.extract_strided_slice %8 {offsets = [10, 0], sizes = [2, 128], strides = [1, 1]} : vector<16x128xf32> to vector<2x128xf32>
    %cst_19 = arith.constant dense<0.000000e+00> : vector<2x128xf32>
    %102 = tpu.matmul %100, %1, %cst_19 {dimension_numbers = #tpu.dot_dimension_numbers<[1], [0], [0], [1], [0, 0, 1, 1], [], []>} : vector<2x32xf32>, vector<32x128xf32>, vector<2x128xf32> -> vector<2x128xf32>
    %103 = arith.addf %101, %102 : vector<2x128xf32>
    %104 = arith.negf %103 : vector<2x128xf32>
    %105 = math.exp %104 : vector<2x128xf32>
    %cst_20 = arith.constant 1.000000e+00 : f32
    %106 = vector.broadcast %cst_20 : f32 to vector<2x128xf32>
    %107 = arith.addf %106, %105 : vector<2x128xf32>
    %108 = arith.divf %106, %107 : vector<2x128xf32>
    %109 = math.tanh %103 : vector<2x128xf32>
    %110 = vector.extract_strided_slice %108 {offsets = [0, 0], sizes = [2, 32], strides = [1, 1]} : vector<2x128xf32> to vector<2x32xf32>
    %111 = vector.extract_strided_slice %108 {offsets = [0, 32], sizes = [2, 32], strides = [1, 1]} : vector<2x128xf32> to vector<2x32xf32>
    %112 = vector.extract_strided_slice %109 {offsets = [0, 64], sizes = [2, 32], strides = [1, 1]} : vector<2x128xf32> to vector<2x32xf32>
    %113 = vector.extract_strided_slice %108 {offsets = [0, 96], sizes = [2, 32], strides = [1, 1]} : vector<2x128xf32> to vector<2x32xf32>
    %114 = arith.mulf %111, %98 : vector<2x32xf32>
    %115 = arith.mulf %110, %112 : vector<2x32xf32>
    %116 = arith.addf %114, %115 : vector<2x32xf32>
    %117 = math.tanh %116 : vector<2x32xf32>
    %118 = arith.mulf %113, %117 : vector<2x32xf32>
    %119 = vector.extract_strided_slice %8 {offsets = [12, 0], sizes = [2, 128], strides = [1, 1]} : vector<16x128xf32> to vector<2x128xf32>
    %cst_21 = arith.constant dense<0.000000e+00> : vector<2x128xf32>
    %120 = tpu.matmul %118, %1, %cst_21 {dimension_numbers = #tpu.dot_dimension_numbers<[1], [0], [0], [1], [0, 0, 1, 1], [], []>} : vector<2x32xf32>, vector<32x128xf32>, vector<2x128xf32> -> vector<2x128xf32>
    %121 = arith.addf %119, %120 : vector<2x128xf32>
    %122 = arith.negf %121 : vector<2x128xf32>
    %123 = math.exp %122 : vector<2x128xf32>
    %cst_22 = arith.constant 1.000000e+00 : f32
    %124 = vector.broadcast %cst_22 : f32 to vector<2x128xf32>
    %125 = arith.addf %124, %123 : vector<2x128xf32>
    %126 = arith.divf %124, %125 : vector<2x128xf32>
    %127 = math.tanh %121 : vector<2x128xf32>
    %128 = vector.extract_strided_slice %126 {offsets = [0, 0], sizes = [2, 32], strides = [1, 1]} : vector<2x128xf32> to vector<2x32xf32>
    %129 = vector.extract_strided_slice %126 {offsets = [0, 32], sizes = [2, 32], strides = [1, 1]} : vector<2x128xf32> to vector<2x32xf32>
    %130 = vector.extract_strided_slice %127 {offsets = [0, 64], sizes = [2, 32], strides = [1, 1]} : vector<2x128xf32> to vector<2x32xf32>
    %131 = vector.extract_strided_slice %126 {offsets = [0, 96], sizes = [2, 32], strides = [1, 1]} : vector<2x128xf32> to vector<2x32xf32>
    %132 = arith.mulf %129, %116 : vector<2x32xf32>
    %133 = arith.mulf %128, %130 : vector<2x32xf32>
    %134 = arith.addf %132, %133 : vector<2x32xf32>
    %135 = math.tanh %134 : vector<2x32xf32>
    %136 = arith.mulf %131, %135 : vector<2x32xf32>
    %137 = vector.extract_strided_slice %8 {offsets = [14, 0], sizes = [2, 128], strides = [1, 1]} : vector<16x128xf32> to vector<2x128xf32>
    %cst_23 = arith.constant dense<0.000000e+00> : vector<2x128xf32>
    %138 = tpu.matmul %136, %1, %cst_23 {dimension_numbers = #tpu.dot_dimension_numbers<[1], [0], [0], [1], [0, 0, 1, 1], [], []>} : vector<2x32xf32>, vector<32x128xf32>, vector<2x128xf32> -> vector<2x128xf32>
    %139 = arith.addf %137, %138 : vector<2x128xf32>
    %140 = arith.negf %139 : vector<2x128xf32>
    %141 = math.exp %140 : vector<2x128xf32>
    %cst_24 = arith.constant 1.000000e+00 : f32
    %142 = vector.broadcast %cst_24 : f32 to vector<2x128xf32>
    %143 = arith.addf %142, %141 : vector<2x128xf32>
    %144 = arith.divf %142, %143 : vector<2x128xf32>
    %145 = math.tanh %139 : vector<2x128xf32>
    %146 = vector.extract_strided_slice %144 {offsets = [0, 0], sizes = [2, 32], strides = [1, 1]} : vector<2x128xf32> to vector<2x32xf32>
    %147 = vector.extract_strided_slice %144 {offsets = [0, 32], sizes = [2, 32], strides = [1, 1]} : vector<2x128xf32> to vector<2x32xf32>
    %148 = vector.extract_strided_slice %145 {offsets = [0, 64], sizes = [2, 32], strides = [1, 1]} : vector<2x128xf32> to vector<2x32xf32>
    %149 = vector.extract_strided_slice %144 {offsets = [0, 96], sizes = [2, 32], strides = [1, 1]} : vector<2x128xf32> to vector<2x32xf32>
    %150 = arith.mulf %147, %134 : vector<2x32xf32>
    %151 = arith.mulf %146, %148 : vector<2x32xf32>
    %152 = arith.addf %150, %151 : vector<2x32xf32>
    %153 = math.tanh %152 : vector<2x32xf32>
    %154 = arith.mulf %149, %153 : vector<2x32xf32>
    %cst_25 = arith.constant dense<0.000000e+00> : vector<2x128xf32>
    %155 = tpu.matmul %154, %3, %cst_25 {dimension_numbers = #tpu.dot_dimension_numbers<[1], [0], [0], [1], [0, 0, 1, 1], [], []>} : vector<2x32xf32>, vector<32x128xf32>, vector<2x128xf32> -> vector<2x128xf32>
    %156 = vector.broadcast %4 : vector<1x128xf32> to vector<2x128xf32>
    %157 = arith.addf %155, %156 : vector<2x128xf32>
    %c0_26 = arith.constant 0 : index
    %c0_27 = arith.constant 0 : index
    %158 = vector.load %arg2[%c0_26, %c0_27] : memref<2x128xf32, #tpu.memory_space<vmem>>, vector<2x128xf32>
    tpu.vector_store %arg2[%c0_26, %c0_27], %157 {strides = array<i32>} : memref<2x128xf32, #tpu.memory_space<vmem>>, vector<2x128xf32>,
    return
  }
}

</mosaic_0001>

<llo_original>
// kernel: _forward_impl.1
$region0: #{_forward_impl.1}
  #allocation0 [shape = 'u32[]', space=smem, size = 0x4, offset = 0x4, fixed_abs, tag = 'smem constant byte address 0x4 - core index']
  #allocation1 [shape = 'u32[72,128]{1,0:T(1,128)}', space=vmem, size = 0x9000, scoped, tag = 'internal scratch']
  %s0 = inlined_call_operand.vmem [shape: f32[16,4], index: 0, kind: input, shape index: {}]
  %s1 = inlined_call_operand.hbm [shape: f32[88,128], index: 1, kind: input, shape index: {}]
  %s2 = inlined_call_operand.hbm [shape: f32[2,128], index: 2, kind: output, shape index: {}]
  %s3 = sld [smem:[#allocation0]]
  $region22: #{_forward_impl.1} parent=0
    _
  %s5 = ssub.s32 1, %s3
  %s6 = scalar_select 0, %s5, %s3
  $region1: #{_forward_impl.1} parent=0
    #allocation2 [shape = 'u8[45056]{0}', space=vmem, size = 0xb000, scoped, tag = 'input window, operand 1, single buffered']
    #allocation3 [shape = 's32[1]{0}', space=sflag, size = 0x4, scoped, tag = 'scoped memory for _forward_impl.1']
    #allocation4 [shape = 's32[1]{0}', space=sflag, size = 0x4, scoped, tag = 'scoped memory for _forward_impl.1']
    #allocation5 [shape = 'u8[1024]{0}', space=vmem, size = 0x400, scoped, tag = 'output window, operand 0, single buffered']
    %7 = vsyncpa [#allocation3], 0
    %8 = vsyncpa [#allocation4], 0
    // Predicated region
    $region2: #{_forward_impl.1} parent=1 // pred_check
      _
    $region3: #{_forward_impl.1} parent=1 // pred_check_branch
      %10 = sbr.rel (0) target = $region5
    $region4: #{_forward_impl.1} parent=1 // pred_region
      _
    $region5: #{_forward_impl.1} parent=1 // pred_fallthru
      _
    // Predicated region
    $region6: #{_forward_impl.1} parent=1 // pred_check
      _
    $region7: #{_forward_impl.1} parent=1 // pred_check_branch
      %12 = sbr.rel (0) target = $region9
    $region8: #{_forward_impl.1} parent=1 // pred_region
      %14 = vsyncadd [#allocation3], 0
      %s15 = sshll.u32 %s1, 4
      %s16 = int_to_ptr.hbm [resolvable:$true] %s15
      %s17 = sshll.u32 [#allocation2], 4
      %s18 = int_to_ptr.vmem [resolvable:$true] %s17
      %23 = dma.hbm_to_vmem [thread:$0]  %s16, 1408, %s18, [#allocation3], 128, 128, 8
    $region9: #{_forward_impl.1} parent=1 // pred_fallthru
      _
    // Predicated region
    $region10: #{_forward_impl.1} parent=1 // pred_check
      _
    $region11: #{_forward_impl.1} parent=1 // pred_check_branch
      %25 = sbr.rel (0) target = $region13
    $region12: #{_forward_impl.1} parent=1 // pred_region
      %27 = dma.done [#allocation3], 1408
    $region13: #{_forward_impl.1} parent=1 // pred_fallthru
      _
    %v28 = vld [vmem:[#allocation2] sm:$0xf]
    %v29 = vld [vmem:[#allocation2 + $0x8] sm:$0xff]
    %v30 = vld [vmem:[#allocation2 + $0x10] sm:$0xff]
    %v31 = vld [vmem:[#allocation2 + $0x18] sm:$0xff]
    %v32 = vld [vmem:[#allocation2 + $0x20] sm:$0xff]
    %v33 = vld [vmem:[#allocation2 + $0x28] sm:$0x1]
    %v34 = vld [vmem:[#allocation2 + $0x30] sm:$0xff]
    %v35 = vld [vmem:[#allocation2 + $0x38] sm:$0xff]
    %v36 = vld [vmem:[#allocation2 + $0x40] sm:$0xff]
    %v37 = vld [vmem:[#allocation2 + $0x48] sm:$0xff]
    %v38 = vld [vmem:[#allocation2 + $0x50] sm:$0x1]
    %v39 = vld [vmem:[%s0] sm:$0xff]
    %v40 = vld [vmem:[%s0 + $0x8] sm:$0xff]
    %v41 = vperm.slane %v33, 0
    %vm42 = vcmask 31744
    %v44 = vsel %vm42, %v39, 0
    %v47 = vsel %vm42, %v40, 0
    %vm49 = vcmask 1043456
    %v51 = vsel %vm49, %v28, 0
    %53 = vmatpush.msra.mxu0 0.0
    %54 = vmatpush.msra.mxu0 0.0
    %55 = vmatpush.msra.mxu0 0.0
    %56 = vmatpush.msra.mxu0 0.0
    %57 = vmatpush.msra.mxu0 0.0
    %58 = vmatpush.msra.mxu0 0.0
    %59 = vmatpush.msra.mxu0 0.0
    %60 = vmatpush.msra.mxu0 0.0
    %61 = vmatpush.msra.mxu0 0.0
    %62 = vmatpush.msra.mxu0 0.0
    %63 = vmatpush.msra.mxu0 0.0
    %64 = vmatpush.msra.mxu0 0.0
    %65 = vmatpush.msra.mxu0 0.0
    %66 = vmatpush.msra.mxu0 0.0
    %67 = vmatpush.msra.mxu0 0.0
    %68 = vmatpush.msra.mxu0 %v51
    %69 = vmatmul.f32.gmra.mxu0 %v44
    %v70 = vpop.f32.mrf.mxu0
    %v71 = vadd.f32 %v41, %v70
    %72 = vmatmul.f32.gmra.mxu0 %v47
    %v73 = vpop.f32.mrf.mxu0
    %v74 = vadd.f32 %v41, %v73
    %75 = vdwg.mxu0
    %vm76 = vcmask 261120
    %v78 = vsel %vm76, 0.0, 0
    %80 = vmatpush.msra.mxu0 0.0
    %81 = vmatpush.msra.mxu0 0.0
    %82 = vmatpush.msra.mxu0 0.0
    %83 = vmatpush.msra.mxu0 0.0
    %84 = vmatpush.msra.mxu0 0.0
    %85 = vmatpush.msra.mxu0 0.0
    %86 = vmatpush.msra.mxu0 0.0
    %87 = vmatpush.msra.mxu0 0.0
    %88 = vmatpush.msra.mxu0 0.0
    %89 = vmatpush.msra.mxu0 0.0
    %90 = vmatpush.msra.mxu0 0.0
    %91 = vmatpush.msra.mxu0 0.0
    %92 = vmatpush.msra.mxu0 %v32
    %93 = vmatpush.msra.mxu0 %v31
    %94 = vmatpush.msra.mxu0 %v30
    %95 = vmatpush.msra.mxu0 %v29
    %96 = vmatmul.f32.gmra.mxu0 %v78
    %v97 = vpop.f32.mrf.mxu0
    %v98 = vadd.f32 0.0, %v97
    %99 = vdwg.mxu0
    %v100 = vadd.f32 %v71, %v98
    %v101 = vxor.u32 %v100, 2147483648
    %v102 = vmul.f32 %v101, 1.442695
    %v103 = vpow.pop %v102
    %v104 = vadd.f32 %v103, 1.0
    %v105 = vrcp.pop %v104
    %v106 = vmul.f32 %v104, %v105
    %v107 = vsub.f32 1.0, %v106
    %v108 = vmul.f32 %v105, %v107
    %v109 = vadd.f32 %v105, %v108
    %vm110 = vweird.f32 %v104
    %vm111 = vweird.f32 %v105
    %vm112 = vmor %vm110, %vm111
    %v113 = vsel %vm112, %v105, %v109
    %v114 = vand.u32 2147483647, %v104
    %vm115 = vcmp.eq.f32.partialorder %v114, 8.507059e+37
    %v116 = vand.u32 %v104, 2147483648
    %v117 = vor.u32 1.1754944e-38, %v116
    %v118 = vsel %vm115, %v117, %v113
    %v119 = vmul.f32 1.0, %v118
    %v120 = vtanh.pop %v100
    %v121 = vmul.f32 %v119, 0.0
    %123 = vrot.lane.b32.xlu0 %v120, 64
    %v124 = vpop.permute.xlu0 %123
    %v126 = vmul.f32 %v119, %v124
    %128 = vrot.lane.b32.xlu0 %v126, 32
    %v129 = vpop.permute.xlu0 %128
    %v131 = vadd.f32 %v121, %v129
    %v132 = vtanh.pop %v131
    %134 = vrot.lane.b32.xlu0 %v132, 64
    %v135 = vpop.permute.xlu0 %134
    %v137 = vmul.f32 %v119, %v135
    %139 = vrot.lane.b32.xlu0 %v137, 32
    %v140 = vpop.permute.xlu0 %139
    %v141 = vsel %vm76, %v140, 0
    %143 = vmatpush.msra.mxu0 0.0
    %144 = vmatpush.msra.mxu0 0.0
    %145 = vmatpush.msra.mxu0 0.0
    %146 = vmatpush.msra.mxu0 0.0
    %147 = vmatpush.msra.mxu0 0.0
    %148 = vmatpush.msra.mxu0 0.0
    %149 = vmatpush.msra.mxu0 0.0
    %150 = vmatpush.msra.mxu0 0.0
    %151 = vmatpush.msra.mxu0 0.0
    %152 = vmatpush.msra.mxu0 0.0
    %153 = vmatpush.msra.mxu0 0.0
    %154 = vmatpush.msra.mxu0 0.0
    %155 = vmatpush.msra.mxu0 %v32
    %156 = vmatpush.msra.mxu0 %v31
    %157 = vmatpush.msra.mxu0 %v30
    %158 = vmatpush.msra.mxu0 %v29
    %159 = vmatmul.f32.gmra.mxu0 %v141
    %v160 = vpop.f32.mrf.mxu0
    %v161 = vadd.f32 0.0, %v160
    %162 = vdwg.mxu0
    %v164 = vrot.slane %v161, 6
    %v166 = vadd.f32 %v71, %v164
    %v167 = vxor.u32 %v166, 2147483648
    %v168 = vmul.f32 %v167, 1.442695
    %v169 = vpow.pop %v168
    %v170 = vadd.f32 %v169, 1.0
    %v171 = vrcp.pop %v170
    %v172 = vmul.f32 %v170, %v171
    %v173 = vsub.f32 1.0, %v172
    %v174 = vmul.f32 %v171, %v173
    %v175 = vadd.f32 %v171, %v174
    %vm176 = vweird.f32 %v170
    %vm177 = vweird.f32 %v171
    %vm178 = vmor %vm176, %vm177
    %v179 = vsel %vm178, %v171, %v175
    %v180 = vand.u32 2147483647, %v170
    %vm181 = vcmp.eq.f32.partialorder %v180, 8.507059e+37
    %v182 = vand.u32 %v170, 2147483648
    %v183 = vor.u32 1.1754944e-38, %v182
    %v184 = vsel %vm181, %v183, %v179
    %v185 = vmul.f32 1.0, %v184
    %v186 = vtanh.pop %v166
    %v188 = vrot.slane %v131, 6
    %v190 = vmul.f32 %v185, %v188
    %192 = vrot.lane.b32.xlu0 %v186, 64
    %v193 = vpop.permute.xlu0 %192
    %v195 = vmul.f32 %v185, %v193
    %197 = vrot.lane.b32.xlu0 %v195, 32
    %v198 = vpop.permute.xlu0 %197
    %v200 = vadd.f32 %v190, %v198
    %v201 = vtanh.pop %v200
    %203 = vrot.lane.b32.xlu0 %v201, 64
    %v204 = vpop.permute.xlu0 %203
    %v206 = vmul.f32 %v185, %v204
    %v208 = vrot.slane %v206, 2
    %209 = vrot.lane.b32.xlu0 %v208, 32
    %v210 = vpop.permute.xlu0 %209
    %v211 = vsel %vm76, %v210, 0
    %213 = vmatpush.msra.mxu0 0.0
    %214 = vmatpush.msra.mxu0 0.0
    %215 = vmatpush.msra.mxu0 0.0
    %216 = vmatpush.msra.mxu0 0.0
    %217 = vmatpush.msra.mxu0 0.0
    %218 = vmatpush.msra.mxu0 0.0
    %219 = vmatpush.msra.mxu0 0.0
    %220 = vmatpush.msra.mxu0 0.0
    %221 = vmatpush.msra.mxu0 0.0
    %222 = vmatpush.msra.mxu0 0.0
    %223 = vmatpush.msra.mxu0 0.0
    %224 = vmatpush.msra.mxu0 0.0
    %225 = vmatpush.msra.mxu0 %v32
    %226 = vmatpush.msra.mxu0 %v31
    %227 = vmatpush.msra.mxu0 %v30
    %228 = vmatpush.msra.mxu0 %v29
    %229 = vmatmul.f32.gmra.mxu0 %v211
    %v230 = vpop.f32.mrf.mxu0
    %v231 = vadd.f32 0.0, %v230
    %232 = vdwg.mxu0
    %v234 = vrot.slane %v231, 4
    %v236 = vadd.f32 %v71, %v234
    %v237 = vxor.u32 %v236, 2147483648
    %v238 = vmul.f32 %v237, 1.442695
    %v239 = vpow.pop %v238
    %v240 = vadd.f32 %v239, 1.0
    %v241 = vrcp.pop %v240
    %v242 = vmul.f32 %v240, %v241
    %v243 = vsub.f32 1.0, %v242
    %v244 = vmul.f32 %v241, %v243
    %v245 = vadd.f32 %v241, %v244
    %vm246 = vweird.f32 %v240
    %vm247 = vweird.f32 %v241
    %vm248 = vmor %vm246, %vm247
    %v249 = vsel %vm248, %v241, %v245
    %v250 = vand.u32 2147483647, %v240
    %vm251 = vcmp.eq.f32.partialorder %v250, 8.507059e+37
    %v252 = vand.u32 %v240, 2147483648
    %v253 = vor.u32 1.1754944e-38, %v252
    %v254 = vsel %vm251, %v253, %v249
    %v255 = vmul.f32 1.0, %v254
    %v256 = vtanh.pop %v236
    %v258 = vrot.slane %v200, 6
    %v260 = vmul.f32 %v255, %v258
    %262 = vrot.lane.b32.xlu0 %v256, 64
    %v263 = vpop.permute.xlu0 %262
    %v265 = vmul.f32 %v255, %v263
    %267 = vrot.lane.b32.xlu0 %v265, 32
    %v268 = vpop.permute.xlu0 %267
    %v270 = vadd.f32 %v260, %v268
    %v271 = vtanh.pop %v270
    %273 = vrot.lane.b32.xlu0 %v271, 64
    %v274 = vpop.permute.xlu0 %273
    %v276 = vmul.f32 %v255, %v274
    %v278 = vrot.slane %v276, 4
    %279 = vrot.lane.b32.xlu0 %v278, 32
    %v280 = vpop.permute.xlu0 %279
    %v281 = vsel %vm76, %v280, 0
    %283 = vmatpush.msra.mxu0 0.0
    %284 = vmatpush.msra.mxu0 0.0
    %285 = vmatpush.msra.mxu0 0.0
    %286 = vmatpush.msra.mxu0 0.0
    %287 = vmatpush.msra.mxu0 0.0
    %288 = vmatpush.msra.mxu0 0.0
    %289 = vmatpush.msra.mxu0 0.0
    %290 = vmatpush.msra.mxu0 0.0
    %291 = vmatpush.msra.mxu0 0.0
    %292 = vmatpush.msra.mxu0 0.0
    %293 = vmatpush.msra.mxu0 0.0
    %294 = vmatpush.msra.mxu0 0.0
    %295 = vmatpush.msra.mxu0 %v32
    %296 = vmatpush.msra.mxu0 %v31
    %297 = vmatpush.msra.mxu0 %v30
    %298 = vmatpush.msra.mxu0 %v29
    %299 = vmatmul.f32.gmra.mxu0 %v281
    %v300 = vpop.f32.mrf.mxu0
    %v301 = vadd.f32 0.0, %v300
    %302 = vdwg.mxu0
    %v304 = vrot.slane %v301, 2
    %v306 = vadd.f32 %v71, %v304
    %v307 = vxor.u32 %v306, 2147483648
    %v308 = vmul.f32 %v307, 1.442695
    %v309 = vpow.pop %v308
    %v310 = vadd.f32 %v309, 1.0
    %v311 = vrcp.pop %v310
    %v312 = vmul.f32 %v310, %v311
    %v313 = vsub.f32 1.0, %v312
    %v314 = vmul.f32 %v311, %v313
    %v315 = vadd.f32 %v311, %v314
    %vm316 = vweird.f32 %v310
    %vm317 = vweird.f32 %v311
    %vm318 = vmor %vm316, %vm317
    %v319 = vsel %vm318, %v311, %v315
    %v320 = vand.u32 2147483647, %v310
    %vm321 = vcmp.eq.f32.partialorder %v320, 8.507059e+37
    %v322 = vand.u32 %v310, 2147483648
    %v323 = vor.u32 1.1754944e-38, %v322
    %v324 = vsel %vm321, %v323, %v319
    %v325 = vmul.f32 1.0, %v324
    %v326 = vtanh.pop %v306
    %v328 = vrot.slane %v270, 6
    %v330 = vmul.f32 %v325, %v328
    %332 = vrot.lane.b32.xlu0 %v326, 64
    %v333 = vpop.permute.xlu0 %332
    %v335 = vmul.f32 %v325, %v333
    %337 = vrot.lane.b32.xlu0 %v335, 32
    %v338 = vpop.permute.xlu0 %337
    %v340 = vadd.f32 %v330, %v338
    %v341 = vtanh.pop %v340
    %343 = vrot.lane.b32.xlu0 %v341, 64
    %v344 = vpop.permute.xlu0 %343
    %v346 = vmul.f32 %v325, %v344
    %v348 = vrot.slane %v346, 6
    %349 = vrot.lane.b32.xlu0 %v348, 32
    %v350 = vpop.permute.xlu0 %349
    %v351 = vsel %vm76, %v350, 0
    %353 = vmatpush.msra.mxu0 0.0
    %354 = vmatpush.msra.mxu0 0.0
    %355 = vmatpush.msra.mxu0 0.0
    %356 = vmatpush.msra.mxu0 0.0
    %357 = vmatpush.msra.mxu0 0.0
    %358 = vmatpush.msra.mxu0 0.0
    %359 = vmatpush.msra.mxu0 0.0
    %360 = vmatpush.msra.mxu0 0.0
    %361 = vmatpush.msra.mxu0 0.0
    %362 = vmatpush.msra.mxu0 0.0
    %363 = vmatpush.msra.mxu0 0.0
    %364 = vmatpush.msra.mxu0 0.0
    %365 = vmatpush.msra.mxu0 %v32
    %366 = vmatpush.msra.mxu0 %v31
    %367 = vmatpush.msra.mxu0 %v30
    %368 = vmatpush.msra.mxu0 %v29
    %369 = vmatmul.f32.gmra.mxu0 %v351
    %v370 = vpop.f32.mrf.mxu0
    %v371 = vadd.f32 0.0, %v370
    %372 = vdwg.mxu0
    %v373 = vadd.f32 %v74, %v371
    %v374 = vxor.u32 %v373, 2147483648
    %v375 = vmul.f32 %v374, 1.442695
    %v376 = vpow.pop %v375
    %v377 = vadd.f32 %v376, 1.0
    %v378 = vrcp.pop %v377
    %v379 = vmul.f32 %v377, %v378
    %v380 = vsub.f32 1.0, %v379
    %v381 = vmul.f32 %v378, %v380
    %v382 = vadd.f32 %v378, %v381
    %vm383 = vweird.f32 %v377
    %vm384 = vweird.f32 %v378
    %vm385 = vmor %vm383, %vm384
    %v386 = vsel %vm385, %v378, %v382
    %v387 = vand.u32 2147483647, %v377
    %vm388 = vcmp.eq.f32.partialorder %v387, 8.507059e+37
    %v389 = vand.u32 %v377, 2147483648
    %v390 = vor.u32 1.1754944e-38, %v389
    %v391 = vsel %vm388, %v390, %v386
    %v392 = vmul.f32 1.0, %v391
    %v393 = vtanh.pop %v373
    %v395 = vrot.slane %v340, 6
    %v397 = vmul.f32 %v392, %v395
    %399 = vrot.lane.b32.xlu0 %v393, 64
    %v400 = vpop.permute.xlu0 %399
    %v402 = vmul.f32 %v392, %v400
    %404 = vrot.lane.b32.xlu0 %v402, 32
    %v405 = vpop.permute.xlu0 %404
    %v407 = vadd.f32 %v397, %v405
    %v408 = vtanh.pop %v407
    %410 = vrot.lane.b32.xlu0 %v408, 64
    %v411 = vpop.permute.xlu0 %410
    %v413 = vmul.f32 %v392, %v411
    %415 = vrot.lane.b32.xlu0 %v413, 32
    %v416 = vpop.permute.xlu0 %415
    %v417 = vsel %vm76, %v416, 0
    %419 = vmatpush.msra.mxu0 0.0
    %420 = vmatpush.msra.mxu0 0.0
    %421 = vmatpush.msra.mxu0 0.0
    %422 = vmatpush.msra.mxu0 0.0
    %423 = vmatpush.msra.mxu0 0.0
    %424 = vmatpush.msra.mxu0 0.0
    %425 = vmatpush.msra.mxu0 0.0
    %426 = vmatpush.msra.mxu0 0.0
    %427 = vmatpush.msra.mxu0 0.0
    %428 = vmatpush.msra.mxu0 0.0
    %429 = vmatpush.msra.mxu0 0.0
    %430 = vmatpush.msra.mxu0 0.0
    %431 = vmatpush.msra.mxu0 %v32
    %432 = vmatpush.msra.mxu0 %v31
    %433 = vmatpush.msra.mxu0 %v30
    %434 = vmatpush.msra.mxu0 %v29
    %435 = vmatmul.f32.gmra.mxu0 %v417
    %v436 = vpop.f32.mrf.mxu0
    %v437 = vadd.f32 0.0, %v436
    %438 = vdwg.mxu0
    %v440 = vrot.slane %v437, 6
    %v442 = vadd.f32 %v74, %v440
    %v443 = vxor.u32 %v442, 2147483648
    %v444 = vmul.f32 %v443, 1.442695
    %v445 = vpow.pop %v444
    %v446 = vadd.f32 %v445, 1.0
    %v447 = vrcp.pop %v446
    %v448 = vmul.f32 %v446, %v447
    %v449 = vsub.f32 1.0, %v448
    %v450 = vmul.f32 %v447, %v449
    %v451 = vadd.f32 %v447, %v450
    %vm452 = vweird.f32 %v446
    %vm453 = vweird.f32 %v447
    %vm454 = vmor %vm452, %vm453
    %v455 = vsel %vm454, %v447, %v451
    %v456 = vand.u32 2147483647, %v446
    %vm457 = vcmp.eq.f32.partialorder %v456, 8.507059e+37
    %v458 = vand.u32 %v446, 2147483648
    %v459 = vor.u32 1.1754944e-38, %v458
    %v460 = vsel %vm457, %v459, %v455
    %v461 = vmul.f32 1.0, %v460
    %v462 = vtanh.pop %v442
    %v464 = vrot.slane %v407, 6
    %v466 = vmul.f32 %v461, %v464
    %468 = vrot.lane.b32.xlu0 %v462, 64
    %v469 = vpop.permute.xlu0 %468
    %v471 = vmul.f32 %v461, %v469
    %473 = vrot.lane.b32.xlu0 %v471, 32
    %v474 = vpop.permute.xlu0 %473
    %v476 = vadd.f32 %v466, %v474
    %v477 = vtanh.pop %v476
    %479 = vrot.lane.b32.xlu0 %v477, 64
    %v480 = vpop.permute.xlu0 %479
    %v482 = vmul.f32 %v461, %v480
    %v484 = vrot.slane %v482, 2
    %485 = vrot.lane.b32.xlu0 %v484, 32
    %v486 = vpop.permute.xlu0 %485
    %v487 = vsel %vm76, %v486, 0
    %489 = vmatpush.msra.mxu0 0.0
    %490 = vmatpush.msra.mxu0 0.0
    %491 = vmatpush.msra.mxu0 0.0
    %492 = vmatpush.msra.mxu0 0.0
    %493 = vmatpush.msra.mxu0 0.0
    %494 = vmatpush.msra.mxu0 0.0
    %495 = vmatpush.msra.mxu0 0.0
    %496 = vmatpush.msra.mxu0 0.0
    %497 = vmatpush.msra.mxu0 0.0
    %498 = vmatpush.msra.mxu0 0.0
    %499 = vmatpush.msra.mxu0 0.0
    %500 = vmatpush.msra.mxu0 0.0
    %501 = vmatpush.msra.mxu0 %v32
    %502 = vmatpush.msra.mxu0 %v31
    %503 = vmatpush.msra.mxu0 %v30
    %504 = vmatpush.msra.mxu0 %v29
    %505 = vmatmul.f32.gmra.mxu0 %v487
    %v506 = vpop.f32.mrf.mxu0
    %v507 = vadd.f32 0.0, %v506
    %508 = vdwg.mxu0
    %v510 = vrot.slane %v507, 4
    %v512 = vadd.f32 %v74, %v510
    %v513 = vxor.u32 %v512, 2147483648
    %v514 = vmul.f32 %v513, 1.442695
    %v515 = vpow.pop %v514
    %v516 = vadd.f32 %v515, 1.0
    %v517 = vrcp.pop %v516
    %v518 = vmul.f32 %v516, %v517
    %v519 = vsub.f32 1.0, %v518
    %v520 = vmul.f32 %v517, %v519
    %v521 = vadd.f32 %v517, %v520
    %vm522 = vweird.f32 %v516
    %vm523 = vweird.f32 %v517
    %vm524 = vmor %vm522, %vm523
    %v525 = vsel %vm524, %v517, %v521
    %v526 = vand.u32 2147483647, %v516
    %vm527 = vcmp.eq.f32.partialorder %v526, 8.507059e+37
    %v528 = vand.u32 %v516, 2147483648
    %v529 = vor.u32 1.1754944e-38, %v528
    %v530 = vsel %vm527, %v529, %v525
    %v531 = vmul.f32 1.0, %v530
    %v532 = vtanh.pop %v512
    %v534 = vrot.slane %v476, 6
    %v536 = vmul.f32 %v531, %v534
    %538 = vrot.lane.b32.xlu0 %v532, 64
    %v539 = vpop.permute.xlu0 %538
    %v541 = vmul.f32 %v531, %v539
    %543 = vrot.lane.b32.xlu0 %v541, 32
    %v544 = vpop.permute.xlu0 %543
    %v546 = vadd.f32 %v536, %v544
    %v547 = vtanh.pop %v546
    %549 = vrot.lane.b32.xlu0 %v547, 64
    %v550 = vpop.permute.xlu0 %549
    %v552 = vmul.f32 %v531, %v550
    %v554 = vrot.slane %v552, 4
    %555 = vrot.lane.b32.xlu0 %v554, 32
    %v556 = vpop.permute.xlu0 %555
    %v557 = vsel %vm76, %v556, 0
    %559 = vmatpush.msra.mxu0 0.0
    %560 = vmatpush.msra.mxu0 0.0
    %561 = vmatpush.msra.mxu0 0.0
    %562 = vmatpush.msra.mxu0 0.0
    %563 = vmatpush.msra.mxu0 0.0
    %564 = vmatpush.msra.mxu0 0.0
    %565 = vmatpush.msra.mxu0 0.0
    %566 = vmatpush.msra.mxu0 0.0
    %567 = vmatpush.msra.mxu0 0.0
    %568 = vmatpush.msra.mxu0 0.0
    %569 = vmatpush.msra.mxu0 0.0
    %570 = vmatpush.msra.mxu0 0.0
    %571 = vmatpush.msra.mxu0 %v32
    %572 = vmatpush.msra.mxu0 %v31
    %573 = vmatpush.msra.mxu0 %v30
    %574 = vmatpush.msra.mxu0 %v29
    %575 = vmatmul.f32.gmra.mxu0 %v557
    %v576 = vpop.f32.mrf.mxu0
    %v577 = vadd.f32 0.0, %v576
    %578 = vdwg.mxu0
    %v580 = vrot.slane %v577, 2
    %v582 = vadd.f32 %v74, %v580
    %v583 = vxor.u32 %v582, 2147483648
    %v584 = vmul.f32 %v583, 1.442695
    %v585 = vpow.pop %v584
    %v586 = vadd.f32 %v585, 1.0
    %v587 = vrcp.pop %v586
    %v588 = vmul.f32 %v586, %v587
    %v589 = vsub.f32 1.0, %v588
    %v590 = vmul.f32 %v587, %v589
    %v591 = vadd.f32 %v587, %v590
    %vm592 = vweird.f32 %v586
    %vm593 = vweird.f32 %v587
    %vm594 = vmor %vm592, %vm593
    %v595 = vsel %vm594, %v587, %v591
    %v596 = vand.u32 2147483647, %v586
    %vm597 = vcmp.eq.f32.partialorder %v596, 8.507059e+37
    %v598 = vand.u32 %v586, 2147483648
    %v599 = vor.u32 1.1754944e-38, %v598
    %v600 = vsel %vm597, %v599, %v595
    %v601 = vmul.f32 1.0, %v600
    %v602 = vtanh.pop %v582
    %v604 = vrot.slane %v546, 6
    %v606 = vmul.f32 %v601, %v604
    %608 = vrot.lane.b32.xlu0 %v602, 64
    %v609 = vpop.permute.xlu0 %608
    %v611 = vmul.f32 %v601, %v609
    %613 = vrot.lane.b32.xlu0 %v611, 32
    %v614 = vpop.permute.xlu0 %613
    %v616 = vadd.f32 %v606, %v614
    %v617 = vtanh.pop %v616
    %619 = vrot.lane.b32.xlu0 %v617, 64
    %v620 = vpop.permute.xlu0 %619
    %v622 = vmul.f32 %v601, %v620
    %v623 = vperm.slane %v38, 0
    %v625 = vrot.slane %v622, 6
    %626 = vrot.lane.b32.xlu0 %v625, 32
    %v627 = vpop.permute.xlu0 %626
    %v628 = vsel %vm76, %v627, 0
    %630 = vmatpush.msra.mxu0 0.0
    %631 = vmatpush.msra.mxu0 0.0
    %632 = vmatpush.msra.mxu0 0.0
    %633 = vmatpush.msra.mxu0 0.0
    %634 = vmatpush.msra.mxu0 0.0
    %635 = vmatpush.msra.mxu0 0.0
    %636 = vmatpush.msra.mxu0 0.0
    %637 = vmatpush.msra.mxu0 0.0
    %638 = vmatpush.msra.mxu0 0.0
    %639 = vmatpush.msra.mxu0 0.0
    %640 = vmatpush.msra.mxu0 0.0
    %641 = vmatpush.msra.mxu0 0.0
    %642 = vmatpush.msra.mxu0 %v37
    %643 = vmatpush.msra.mxu0 %v36
    %644 = vmatpush.msra.mxu0 %v35
    %645 = vmatpush.msra.mxu0 %v34
    %646 = vmatmul.f32.gmra.mxu0 %v628
    %v647 = vpop.f32.mrf.mxu0
    %v648 = vadd.f32 %v623, %v647
    %649 = vdwg.mxu0
    %650 = vst [vmem:[#allocation5] sm:$0x3] %v648
    // Predicated region
    $region14: #{_forward_impl.1} parent=1 // pred_check
      _
    $region15: #{_forward_impl.1} parent=1 // pred_check_branch
      %652 = sbr.rel (0) target = $region17
    $region16: #{_forward_impl.1} parent=1 // pred_region
      %654 = vsyncadd [#allocation4], 0
      %s656 = sshll.u32 [#allocation5], 4
      %s657 = int_to_ptr.vmem [resolvable:$true] %s656
      %s658 = sshll.u32 %s2, 4
      %s659 = int_to_ptr.hbm [resolvable:$true] %s658
      %661 = dma.vmem_to_hbm [thread:$0]  %s657, 32, %s659, [#allocation4]
    $region17: #{_forward_impl.1} parent=1 // pred_fallthru
      _
    // Predicated region
    $region18: #{_forward_impl.1} parent=1 // pred_check
      _
    $region19: #{_forward_impl.1} parent=1 // pred_check_branch
      %663 = sbr.rel (0) target = $region21
    $region20: #{_forward_impl.1} parent=1 // pred_region
      %665 = dma.done [#allocation4], 32
    $region21: #{_forward_impl.1} parent=1 // pred_fallthru
      _
    %666 = vsyncpa [#allocation3], 1
    %667 = vsyncpa [#allocation4], 1

</llo_original>
